<compile_context>
chip_gen: v6e
topology: v6e:2x2x1
jax: 0.10.0
libtpu: 0.0.40
codegen_flags: <defaults>
</compile_context>

<pallas_src>
import jax
import jax.numpy as jnp
from jax import lax
from jax.experimental import pallas as pl
from jax.experimental.pallas import tpu as pltpu

_LANE = 128
_MIB = 1024 * 1024


def _round_up(x, m):
    return ((x + m - 1) // m) * m


def _vmem_limit_bytes(nbytes_needed):
    """Scoped-VMEM limit derived from actual buffer sizes, clamped to the chip."""
    try:
        cap = int(pltpu.get_tpu_info().vmem_capacity_bytes)
    except Exception:
        cap = 64 * _MIB  # conservative fallback (v7x physical VMEM per core)
    return int(min(max(nbytes_needed + 4 * _MIB, 32 * _MIB), int(cap * 0.9)))


def _proj_kernel(*, d_kp, scale):
    """Fused [Q | K | V] projection for one (batch, seq-tile) grid point."""

    def kernel(emb_ref, w_ref, q_ref, k_ref, v_ref):
        # emb_ref : (ts, d_model); w_ref : (d_model, 2*d_kp + d_vp)
        qkv = jnp.dot(emb_ref[...], w_ref[...],
                      preferred_element_type=jnp.float32)
        # Softmax scale folded into Q here (ts*d_kp mults, cheapest place).
        q_ref[...] = (qkv[:, :d_kp] * scale).astype(q_ref.dtype)
        k_ref[...] = qkv[:, d_kp:2 * d_kp].astype(k_ref.dtype)
        v_ref[...] = qkv[:, 2 * d_kp:].astype(v_ref.dtype)

    return kernel


def _attn_kernel(*, tq, d_vp):
    """Causal attention for one (batch, query-tile) grid point.

    K/V for the whole (padded) sequence are resident VMEM inputs; only the KV
    tiles [0, qi] are visited (online softmax), so work scales with the causal
    triangle instead of the full rectangle.
    """

    def kernel(q_ref, k_ref, v_ref, o_ref, m_sc, l_sc, acc_sc):
        qi = pl.program_id(1)
        q = q_ref[...]                                          # (tq, d_kp), pre-scaled
        # Global query-row index per local row; hoisted out of the KV loop.
        row = lax.broadcasted_iota(jnp.int32, (tq, tq), 0) + qi * tq
        col = lax.broadcasted_iota(jnp.int32, (tq, tq), 1)

        m_sc[...] = jnp.full((tq, 1), -jnp.inf, jnp.float32)
        l_sc[...] = jnp.zeros((tq, 1), jnp.float32)
        acc_sc[...] = jnp.zeros((tq, d_vp), jnp.float32)

        @pl.loop(0, qi + 1)
        def _(kv):
            kstart = pl.multiple_of(kv * tq, tq)
            k_t = k_ref[pl.ds(kstart, tq), :]                   # (tq, d_kp)
            v_t = v_ref[pl.ds(kstart, tq), :]                   # (tq, d_vp)
            # scores = q @ k_t^T without materializing a transpose.
            s = lax.dot_general(q, k_t, (((1,), (1,)), ((), ())),
                                preferred_element_type=jnp.float32)  # (tq, tq)
            # Causal mask: identity on every sub-diagonal tile, active only on
            # the diagonal tile (kv == qi).  Also masks the zero-padded keys
            # for real query rows (their global index is always > row).
            s = jnp.where(col + kv * tq <= row, s, -jnp.inf)

            m_prev = m_sc[...]
            m_new = jnp.maximum(m_prev, jnp.max(s, axis=-1, keepdims=True))
            alpha = jnp.exp(m_prev - m_new)
            p = jnp.exp(s - m_new)
            l_sc[...] = alpha * l_sc[...] + jnp.sum(p, axis=-1, keepdims=True)
            acc_sc[...] = alpha * acc_sc[...] + jnp.dot(
                p.astype(v_t.dtype), v_t, preferred_element_type=jnp.float32)
            m_sc[...] = m_new

        # Exact final normalization (no approx-reciprocal error in the output).
        o_ref[...] = (acc_sc[...] * (1.0 / l_sc[...])).astype(o_ref.dtype)

    return kernel


def head_forward(emb, wq, wk, wv, *, compute_dtype=None):
    """emb: (B, n, d_model); wq/wk: (d_model, d_k); wv: (d_model, d_v).

    Weights are the transposed nn.Linear weights.  Returns (B, n, d_v),
    matching Head.forward(emb, bool_mask=True).
    compute_dtype: optional operand dtype for the attention matmuls (e.g.
    jnp.bfloat16 on v5e); accumulation and softmax stay f32.
    """
    B, n, d_model = emb.shape
    d_k = wq.shape[1]
    d_v = wv.shape[1]
    out_dtype = emb.dtype
    cdt = jnp.dtype(compute_dtype) if compute_dtype is not None else jnp.dtype(emb.dtype)

    # Lane-aligned head dims (exact: zero Q/K columns contribute 0 to q.k^T,
    # zero V columns are sliced away).
    d_kp = _round_up(d_k, _LANE)
    d_vp = _round_up(d_v, _LANE)

    # Query/KV tile and sequence padding.  Padded keys are "in the future" of
    # every real query row, so the causal mask alone keeps the result exact.
    tq = 256 if n >= 1024 else 128
    n_pad = _round_up(max(n, tq), tq)
    nq = n_pad // tq

    emb_p = jnp.pad(emb, ((0, 0), (0, n_pad - n), (0, 0)))
    wq_p = jnp.pad(wq, ((0, 0), (0, d_kp - d_k)))
    wk_p = jnp.pad(wk, ((0, 0), (0, d_kp - d_k)))
    wv_p = jnp.pad(wv, ((0, 0), (0, d_vp - d_v)))
    w_fused = jnp.concatenate([wq_p, wk_p, wv_p], axis=1).astype(emb.dtype)
    wtot = 2 * d_kp + d_vp

    in_isz = jnp.dtype(emb.dtype).itemsize
    c_isz = cdt.itemsize
    scale = float(d_k) ** -0.5

    # ---------------- Kernel 1: fused Q|K|V projection ----------------
    proj_need = (2 * tq * d_model * in_isz + 2 * d_model * wtot * in_isz
                 + 2 * tq * wtot * c_isz + tq * wtot * 4)
    proj_cost = pl.CostEstimate(
        flops=int(2 * B * n_pad * d_model * wtot),
        transcendentals=0,
        bytes_accessed=int((B * n_pad * d_model + d_model * wtot) * in_isz
                           + B * n_pad * wtot * c_isz),
    )
    q_all, k_all, v_all = pl.pallas_call(
        _proj_kernel(d_kp=d_kp, scale=scale),
        out_shape=(
            jax.ShapeDtypeStruct((B, n_pad, d_kp), cdt),
            jax.ShapeDtypeStruct((B, n_pad, d_kp), cdt),
            jax.ShapeDtypeStruct((B, n_pad, d_vp), cdt),
        ),
        grid_spec=pltpu.PrefetchScalarGridSpec(
            num_scalar_prefetch=0,
            grid=(B, nq),
            in_specs=[
                pl.BlockSpec((None, tq, d_model), lambda b, si: (b, si, 0)),
                pl.BlockSpec((d_model, wtot), lambda b, si: (0, 0)),
            ],
            out_specs=(
                pl.BlockSpec((None, tq, d_kp), lambda b, si: (b, si, 0)),
                pl.BlockSpec((None, tq, d_kp), lambda b, si: (b, si, 0)),
                pl.BlockSpec((None, tq, d_vp), lambda b, si: (b, si, 0)),
            ),
        ),
        compiler_params=pltpu.CompilerParams(
            dimension_semantics=("parallel", "parallel"),
            vmem_limit_bytes=_vmem_limit_bytes(proj_need),
        ),
        cost_estimate=proj_cost,
    )(emb_p, w_fused)

    # ---------------- Kernel 2: causal attention ----------------
    pairs = tq * tq * nq * (nq + 1) // 2            # causal score/exp count per batch
    attn_need = (2 * tq * d_kp * c_isz + 2 * n_pad * d_kp * c_isz
                 + 2 * n_pad * d_vp * c_isz + 2 * tq * d_vp * in_isz
                 + 4 * tq * tq * 4 + 3 * tq * d_vp * 4)
    attn_cost = pl.CostEstimate(
        flops=int(2 * B * pairs * (d_kp + d_vp)),
        transcendentals=int(B * pairs),
        bytes_accessed=int(B * n_pad * (2 * d_kp + d_vp) * c_isz
                           + B * n_pad * d_vp * in_isz),
    )
    out_pad = pl.pallas_call(
        _attn_kernel(tq=tq, d_vp=d_vp),
        out_shape=jax.ShapeDtypeStruct((B, n_pad, d_vp), out_dtype),
        grid_spec=pltpu.PrefetchScalarGridSpec(
            num_scalar_prefetch=0,
            grid=(B, nq),
            in_specs=[
                pl.BlockSpec((None, tq, d_kp), lambda b, qi: (b, qi, 0)),
                pl.BlockSpec((None, n_pad, d_kp), lambda b, qi: (b, 0, 0)),
                pl.BlockSpec((None, n_pad, d_vp), lambda b, qi: (b, 0, 0)),
            ],
            out_specs=pl.BlockSpec((None, tq, d_vp), lambda b, qi: (b, qi, 0)),
            scratch_shapes=[
                pltpu.VMEM((tq, 1), jnp.float32),     # running max
                pltpu.VMEM((tq, 1), jnp.float32),     # running sum
                pltpu.VMEM((tq, d_vp), jnp.float32),  # output accumulator
            ],
        ),
        compiler_params=pltpu.CompilerParams(
            # No cross-grid-step state -> both axes megacore-parallel.
            dimension_semantics=("parallel", "parallel"),
            vmem_limit_bytes=_vmem_limit_bytes(attn_need),
        ),
        cost_estimate=attn_cost,
    )(q_all, k_all, v_all)

    return out_pad[:, :n, :d_v]


def head_reference(emb, wq, wk, wv):
    """Pure-JAX reference matching the PyTorch forward (bool_mask=True)."""
    d_k = wq.shape[1]
    q = emb @ wq
    k = emb @ wk
    v = emb @ wv
    scores = jnp.einsum("bqd,bkd->bqk", q, k) * d_k ** -0.5
    n = scores.shape[1]
    mask = jnp.tril(jnp.ones((n, n), dtype=bool))
    scores = jnp.where(mask, scores, -jnp.inf)
    attn = jax.nn.softmax(scores, axis=-1)
    return attn @ v


if __name__ == "__main__":
    # Small shapes consistent with the module: seq length n, model dim d_model.
    B, n, d_model, d_k, d_v = 2, 8, 32, 16, 16

    key = jax.random.PRNGKey(0)
    k_emb, k_q, k_k, k_v = jax.random.split(key, 4)

    emb = jax.random.normal(k_emb, (B, n, d_model), dtype=jnp.float32)
    # nn.Linear(d_model, d_k, bias=False) stores weight as (d_k, d_model);
    # we use the transposed (d_model, d_k) form for right-multiplication.
    wq = jax.random.normal(k_q, (d_model, d_k), dtype=jnp.float32) * (d_model ** -0.5)
    wk = jax.random.normal(k_k, (d_model, d_k), dtype=jnp.float32) * (d_model ** -0.5)
    wv = jax.random.normal(k_v, (d_model, d_v), dtype=jnp.float32) * (d_model ** -0.5)

    out = head_forward(emb, wq, wk, wv)
    out = jax.block_until_ready(out)

    ref = head_reference(emb, wq, wk, wv)
    assert out.shape == (B, n, d_v)
    assert jnp.allclose(out, ref, atol=2e-3, rtol=2e-3), "mismatch vs reference"

    print("KERNEL_OK")
</pallas_src>

<mosaic_0001>
module attributes {stable_mosaic.version = 11 : i64} {
  func.func @kernel(%arg0: i32, %arg1: i32, %arg2: memref<1x128x32xf32, #tpu.memory_space<vmem>>, %arg3: memref<32x384xf32, #tpu.memory_space<vmem>>, %arg4: memref<1x128x128xf32, #tpu.memory_space<vmem>>, %arg5: memref<1x128x128xf32, #tpu.memory_space<vmem>>, %arg6: memref<1x128x128xf32, #tpu.memory_space<vmem>>) attributes {dimension_semantics = [#tpu.dimension_semantics<parallel>, #tpu.dimension_semantics<parallel>], iteration_bounds = array<i64: 2, 1>, scalar_prefetch = 0 : i64, scratch_operands = 0 : i64, tpu.core_type = #tpu.core_type<tc>, window_params = [{transform_indices = @transform_0, window_bounds = array<i64: 1, 128, 32>}, {pipeline_mode = #tpu.pipeline_mode<synchronous>, transform_indices = @transform_1, window_bounds = array<i64: 32, 384>}, {transform_indices = @transform_2, window_bounds = array<i64: 1, 128, 128>}, {transform_indices = @transform_3, window_bounds = array<i64: 1, 128, 128>}, {transform_indices = @transform_4, window_bounds = array<i64: 1, 128, 128>}]} {
    %c0 = arith.constant 0 : index
    %c0_0 = arith.constant 0 : index
    %c0_1 = arith.constant 0 : index
    %0 = vector.load %arg2[%c0, %c0_0, %c0_1] : memref<1x128x32xf32, #tpu.memory_space<vmem>>, vector<1x128x32xf32>
    %1 = vector.shape_cast %0 : vector<1x128x32xf32> to vector<128x32xf32>
    %c0_2 = arith.constant 0 : index
    %c0_3 = arith.constant 0 : index
    %2 = vector.load %arg3[%c0_2, %c0_3] : memref<32x384xf32, #tpu.memory_space<vmem>>, vector<32x384xf32>
    %cst = arith.constant dense<0.000000e+00> : vector<128x384xf32>
    %3 = tpu.matmul %1, %2, %cst {dimension_numbers = #tpu.dot_dimension_numbers<[1], [0], [0], [1], [0, 0, 1, 1], [], []>} : vector<128x32xf32>, vector<32x384xf32>, vector<128x384xf32> -> vector<128x384xf32>
    %4 = vector.extract_strided_slice %3 {offsets = [0, 0], sizes = [128, 128], strides = [1, 1]} : vector<128x384xf32> to vector<128x128xf32>
    %cst_4 = arith.constant 2.500000e-01 : f32
    %5 = vector.broadcast %cst_4 : f32 to vector<128x128xf32>
    %6 = arith.mulf %4, %5 : vector<128x128xf32>
    %c0_5 = arith.constant 0 : index
    %c0_6 = arith.constant 0 : index
    %c0_7 = arith.constant 0 : index
    %7 = vector.load %arg4[%c0_5, %c0_6, %c0_7] : memref<1x128x128xf32, #tpu.memory_space<vmem>>, vector<1x128x128xf32>
    %8 = vector.shape_cast %7 : vector<1x128x128xf32> to vector<128x128xf32>
    %9 = vector.shape_cast %6 : vector<128x128xf32> to vector<1x128x128xf32>
    tpu.vector_store %arg4[%c0_5, %c0_6, %c0_7], %9 {strides = array<i32>} : memref<1x128x128xf32, #tpu.memory_space<vmem>>, vector<1x128x128xf32>,
    %10 = vector.extract_strided_slice %3 {offsets = [0, 128], sizes = [128, 128], strides = [1, 1]} : vector<128x384xf32> to vector<128x128xf32>
    %c0_8 = arith.constant 0 : index
    %c0_9 = arith.constant 0 : index
    %c0_10 = arith.constant 0 : index
    %11 = vector.load %arg5[%c0_8, %c0_9, %c0_10] : memref<1x128x128xf32, #tpu.memory_space<vmem>>, vector<1x128x128xf32>
    %12 = vector.shape_cast %11 : vector<1x128x128xf32> to vector<128x128xf32>
    %13 = vector.shape_cast %10 : vector<128x128xf32> to vector<1x128x128xf32>
    tpu.vector_store %arg5[%c0_8, %c0_9, %c0_10], %13 {strides = array<i32>} : memref<1x128x128xf32, #tpu.memory_space<vmem>>, vector<1x128x128xf32>,
    %14 = vector.extract_strided_slice %3 {offsets = [0, 256], sizes = [128, 128], strides = [1, 1]} : vector<128x384xf32> to vector<128x128xf32>
    %c0_11 = arith.constant 0 : index
    %c0_12 = arith.constant 0 : index
    %c0_13 = arith.constant 0 : index
    %15 = vector.load %arg6[%c0_11, %c0_12, %c0_13] : memref<1x128x128xf32, #tpu.memory_space<vmem>>, vector<1x128x128xf32>
    %16 = vector.shape_cast %15 : vector<1x128x128xf32> to vector<128x128xf32>
    %17 = vector.shape_cast %14 : vector<128x128xf32> to vector<1x128x128xf32>
    tpu.vector_store %arg6[%c0_11, %c0_12, %c0_13], %17 {strides = array<i32>} : memref<1x128x128xf32, #tpu.memory_space<vmem>>, vector<1x128x128xf32>,
    return
  }
  func.func @transform_0(%arg0: i32, %arg1: i32) -> (i32, i32, i32) {
    %c0_i32 = arith.constant 0 : i32
    %c0_i32_0 = arith.constant 0 : i32
    return %arg0, %arg1, %c0_i32 : i32, i32, i32
  }
  func.func @transform_1(%arg0: i32, %arg1: i32) -> (i32, i32) {
    %c0_i32 = arith.constant 0 : i32
    %c0_i32_0 = arith.constant 0 : i32
    %c0_i32_1 = arith.constant 0 : i32
    return %c0_i32, %c0_i32_0 : i32, i32
  }
  func.func @transform_2(%arg0: i32, %arg1: i32) -> (i32, i32, i32) {
    %c0_i32 = arith.constant 0 : i32
    %c0_i32_0 = arith.constant 0 : i32
    return %arg0, %arg1, %c0_i32 : i32, i32, i32
  }
  func.func @transform_3(%arg0: i32, %arg1: i32) -> (i32, i32, i32) {
    %c0_i32 = arith.constant 0 : i32
    %c0_i32_0 = arith.constant 0 : i32
    return %arg0, %arg1, %c0_i32 : i32, i32, i32
  }
  func.func @transform_4(%arg0: i32, %arg1: i32) -> (i32, i32, i32) {
    %c0_i32 = arith.constant 0 : i32
    %c0_i32_0 = arith.constant 0 : i32
    return %arg0, %arg1, %c0_i32 : i32, i32, i32
  }
}

</mosaic_0001>

<llo_original>
// kernel: tpu_custom_call.1
$region0: #{tpu_custom_call.1}
  #allocation0 [shape = 'u32[]', space=smem, size = 0x4, offset = 0x4, fixed_abs, tag = 'smem constant byte address 0x4 - core index']
  #allocation1 [shape = 'u32[144,128]{1,0:T(1,128)}', space=vmem, size = 0x12000, scoped, tag = 'internal scratch']
  %s0 = inlined_call_operand.vmem [shape: f32[2,128,32], index: 0, kind: input, shape index: {}]
  %s1 = inlined_call_operand.vmem [shape: f32[32,384], index: 1, kind: input, shape index: {}]
  %s2 = inlined_call_operand.hbm [shape: f32[2,128,128], index: 2, kind: output, shape index: {0}]
  %s3 = inlined_call_operand.hbm [shape: f32[2,128,128], index: 3, kind: output, shape index: {1}]
  %s4 = inlined_call_operand.hbm [shape: f32[2,128,128], index: 4, kind: output, shape index: {2}]
  %5 = xla_tuple %s2, %s3, %s4
  %s6 = sld [smem:[#allocation0]]
  $region57: #{tpu_custom_call.1} parent=0
    _
  %s8 = ssub.s32 1, %s6
  %s9 = scalar_select 0, %s8, %s6
  $region1: #{tpu_custom_call.1} parent=0
    #allocation2 [shape = 'u8[131072]{0}', space=vmem, size = 0x20000, scoped, tag = 'output window, operand 0']
    #allocation3 [shape = 's32[2]{0}', space=sflag, size = 0x8, scoped, tag = 'scoped memory for tpu_custom_call.1']
    #allocation4 [shape = 'u8[131072]{0}', space=vmem, size = 0x20000, scoped, tag = 'output window, operand 1']
    #allocation5 [shape = 's32[2]{0}', space=sflag, size = 0x8, scoped, tag = 'scoped memory for tpu_custom_call.1']
    #allocation6 [shape = 'u8[131072]{0}', space=vmem, size = 0x20000, scoped, tag = 'output window, operand 2']
    %10 = vsyncpa [#allocation3], 0
    %s11 = scalar_lea.sflag [#allocation3], 1
    %12 = vsyncpa %s11, 0
    %13 = vsyncpa [#allocation5], 0
    %s14 = scalar_lea.sflag [#allocation5], 1
    %15 = vsyncpa %s14, 0
    loop: start=0, step=1, limit=4
    $region2: #{tpu_custom_call.1} parent=1 // loop_pre_header
      _
    $region3: #{tpu_custom_call.1} parent=1 // loop_header
      %s17 = sphi 0, %s21
      %p18 = scmp.ge.s32.totalorder %s17, 4
      %s24 = sphi 0, %s36
      %s25 = sphi 0, %s32
      %s26 = sphi 0, %s24
      %s27 = sphi 0, %s25
      %s28 = sphi 0, %s26
      %s29 = sphi 0, %s27
      %s41 = sphi 0, %s43
      %s44 = sphi 0, %s41
      %s45 = sphi 0, %s44
      %s61 = sphi 0, %s45
      %s65 = sphi 0, %s65
      %s67 = sphi 0, %s65
      %s68 = sphi 0, %s67
      %s82 = sphi 0, %s68
      %s90 = sphi 0, %s92
      %s93 = sphi 0, %s90
      %s94 = sphi 0, %s93
      %s110 = sphi 0, %s94
      %s118 = sphi 0, %s120
      %s121 = sphi 0, %s118
      %s122 = sphi 0, %s121
      %s138 = sphi 0, %s122
      %s146 = sphi 0, %s148
      %s149 = sphi 0, %s146
      %s150 = sphi 0, %s149
      %s166 = sphi 0, %s150
    $region4: #{tpu_custom_call.1} parent=1 // loop_header_branch
      %20 = sbr.rel (%p18) target = $region8
    $region5: #{tpu_custom_call.1} parent=1 // loop_body
      %s22 = ssub.s32 %s17, 1
      %s23 = ssub.s32 %s17, 2
      %s30 = sadd.s32 1, %s25
      %p31 = scmp.ge.s32.totalorder %s30, 1
      %s32 = scalar_select %p31, 0, %s30
      %s33 = sadd.s32 1, %s24
      %s34 = scalar_select %p31, %s33, %s24
      %p35 = scmp.ge.s32.totalorder %s34, 2
      %s36 = scalar_select %p35, 0, %s34
      %s37 = ssub.s32 %s24, %s36
      %s38 = ssub.s32 %s25, %s32
      %s39 = sor.u32 %s37, %s38
      %p40 = scmp.eq.s32.totalorder %s39, 0
      %s42 = sadd.s32 %s41, 1
      %s43 = scalar_select %p40, %s41, %s42
      %p46 = pneg %p40
      %p47 = scmp.eq.s32.totalorder %s17, 1
      %p48 = por %p46, %p47
      %p49 = scmp.ne.s32.totalorder %s41, %s44
      %p50 = scmp.eq.s32.totalorder %s17, 0
      %p51 = por %p49, %p50
      %p52 = scmp.ne.s32.totalorder %s41, %s44
      %p53 = scmp.eq.s32.totalorder %s22, 1
      %p54 = por %p52, %p53
      %p55 = scmp.ne.s32.totalorder %s44, %s45
      %p56 = scmp.eq.s32.totalorder %s22, 0
      %p57 = por %p55, %p56
      %p58 = scmp.ne.s32.totalorder %s44, %s45
      %p59 = scmp.eq.s32.totalorder %s23, 1
      %p60 = por %p58, %p59
      %p62 = scmp.ne.s32.totalorder %s45, %s61
      %p63 = scmp.eq.s32.totalorder %s23, 0
      %p64 = por %p62, %p63
      %s66 = sadd.s32 %s65, 1
      %p69 = scmp.eq.s32.totalorder %s17, 1
      %p70 = scmp.ne.s32.totalorder %s65, %s67
      %p71 = scmp.eq.s32.totalorder %s17, 0
      %p72 = por %p70, %p71
      %p73 = scmp.ne.s32.totalorder %s65, %s67
      %p74 = scmp.eq.s32.totalorder %s22, 1
      %p75 = por %p73, %p74
      %p76 = scmp.ne.s32.totalorder %s67, %s68
      %p77 = scmp.eq.s32.totalorder %s22, 0
      %p78 = por %p76, %p77
      %p79 = scmp.ne.s32.totalorder %s67, %s68
      %p80 = scmp.eq.s32.totalorder %s23, 1
      %p81 = por %p79, %p80
      %p83 = scmp.ne.s32.totalorder %s68, %s82
      %p84 = scmp.eq.s32.totalorder %s23, 0
      %p85 = por %p83, %p84
      %s86 = ssub.s32 %s24, %s36
      %s87 = ssub.s32 %s25, %s32
      %s88 = sor.u32 %s86, %s87
      %p89 = scmp.eq.s32.totalorder %s88, 0
      %s91 = sadd.s32 %s90, 1
      %s92 = scalar_select %p89, %s90, %s91
      %p95 = pneg %p89
      %p96 = scmp.eq.s32.totalorder %s17, 1
      %p97 = por %p95, %p96
      %p98 = scmp.ne.s32.totalorder %s90, %s93
      %p99 = scmp.eq.s32.totalorder %s17, 0
      %p100 = por %p98, %p99
      %p101 = scmp.ne.s32.totalorder %s90, %s93
      %p102 = scmp.eq.s32.totalorder %s22, 1
      %p103 = por %p101, %p102
      %p104 = scmp.ne.s32.totalorder %s93, %s94
      %p105 = scmp.eq.s32.totalorder %s22, 0
      %p106 = por %p104, %p105
      %p107 = scmp.ne.s32.totalorder %s93, %s94
      %p108 = scmp.eq.s32.totalorder %s23, 1
      %p109 = por %p107, %p108
      %p111 = scmp.ne.s32.totalorder %s94, %s110
      %p112 = scmp.eq.s32.totalorder %s23, 0
      %p113 = por %p111, %p112
      %s114 = ssub.s32 %s24, %s36
      %s115 = ssub.s32 %s25, %s32
      %s116 = sor.u32 %s114, %s115
      %p117 = scmp.eq.s32.totalorder %s116, 0
      %s119 = sadd.s32 %s118, 1
      %s120 = scalar_select %p117, %s118, %s119
      %p123 = pneg %p117
      %p124 = scmp.eq.s32.totalorder %s17, 1
      %p125 = por %p123, %p124
      %p126 = scmp.ne.s32.totalorder %s118, %s121
      %p127 = scmp.eq.s32.totalorder %s17, 0
      %p128 = por %p126, %p127
      %p129 = scmp.ne.s32.totalorder %s118, %s121
      %p130 = scmp.eq.s32.totalorder %s22, 1
      %p131 = por %p129, %p130
      %p132 = scmp.ne.s32.totalorder %s121, %s122
      %p133 = scmp.eq.s32.totalorder %s22, 0
      %p134 = por %p132, %p133
      %p135 = scmp.ne.s32.totalorder %s121, %s122
      %p136 = scmp.eq.s32.totalorder %s23, 1
      %p137 = por %p135, %p136
      %p139 = scmp.ne.s32.totalorder %s122, %s138
      %p140 = scmp.eq.s32.totalorder %s23, 0
      %p141 = por %p139, %p140
      %s142 = ssub.s32 %s24, %s36
      %s143 = ssub.s32 %s25, %s32
      %s144 = sor.u32 %s142, %s143
      %p145 = scmp.eq.s32.totalorder %s144, 0
      %s147 = sadd.s32 %s146, 1
      %s148 = scalar_select %p145, %s146, %s147
      %p151 = pneg %p145
      %p152 = scmp.eq.s32.totalorder %s17, 1
      %p153 = por %p151, %p152
      %p154 = scmp.ne.s32.totalorder %s146, %s149
      %p155 = scmp.eq.s32.totalorder %s17, 0
      %p156 = por %p154, %p155
      %p157 = scmp.ne.s32.totalorder %s146, %s149
      %p158 = scmp.eq.s32.totalorder %s22, 1
      %p159 = por %p157, %p158
      %p160 = scmp.ne.s32.totalorder %s149, %s150
      %p161 = scmp.eq.s32.totalorder %s22, 0
      %p162 = por %p160, %p161
      %p163 = scmp.ne.s32.totalorder %s149, %s150
      %p164 = scmp.eq.s32.totalorder %s23, 1
      %p165 = por %p163, %p164
      %p167 = scmp.ne.s32.totalorder %s150, %s166
      %p168 = scmp.eq.s32.totalorder %s23, 0
      %p169 = por %p167, %p168
      %p170 = scmp.le.s32.totalorder 1, %s17
      %p171 = scmp.lt.s32.totalorder %s17, 3
      %p172 = pnand %p170, %p171
      %p173 = pneg %p172
      // Predicated region
      $region9: #{tpu_custom_call.1} parent=5 // pred_check
        _
      $region10: #{tpu_custom_call.1} parent=5 // pred_check_branch
        %175 = sbr.rel (%p172) target = $region12
      $region11: #{tpu_custom_call.1} parent=5 // pred_region
        %s176 = ssub.s32 %s17, 1
        // Predicated region
        $region13: #{tpu_custom_call.1} parent=11 // pred_check
          %p177 = pneg %p78
        $region14: #{tpu_custom_call.1} parent=11 // pred_check_branch
          %179 = sbr.rel (%p177) target = $region16
        $region15: #{tpu_custom_call.1} parent=11 // pred_region
          _
        $region16: #{tpu_custom_call.1} parent=11 // pred_fallthru
          _
      $region12: #{tpu_custom_call.1} parent=5 // pred_fallthru
        _
      %p180 = scmp.lt.s32.totalorder %s17, 2
      // Predicated region
      $region17: #{tpu_custom_call.1} parent=5 // pred_check
        %p181 = pneg %p180
      $region18: #{tpu_custom_call.1} parent=5 // pred_check_branch
        %183 = sbr.rel (%p181) target = $region20
      $region19: #{tpu_custom_call.1} parent=5 // pred_region
        // Predicated region
        $region21: #{tpu_custom_call.1} parent=19 // pred_check
          %p184 = pneg %p51
        $region22: #{tpu_custom_call.1} parent=19 // pred_check_branch
          %186 = sbr.rel (%p184) target = $region24
        $region23: #{tpu_custom_call.1} parent=19 // pred_region
          %s187 = smul.u32 16, %s25
          %p188 = scmp.lt.s32.totalorder %s24, 1
          %s189 = scalar_select %p188, %s24, 1
          %p190 = scmp.lt.s32.totalorder %s187, 15
          %s191 = scalar_select %p190, %s187, 15
          %s192 = smul.addr %s189, 16
          %s193 = sadd.s32 %s191, %s192
          %s194 = smul.addr %s193, 8
          %s195 = scalar_lea.vmem %s0, %s194
          %s196 = smul.u32 16, %s25
        $region24: #{tpu_custom_call.1} parent=19 // pred_fallthru
          _
      $region20: #{tpu_custom_call.1} parent=5 // pred_fallthru
        _
      %p197 = scmp.le.s32.totalorder 1, %s17
      %p198 = scmp.lt.s32.totalorder %s17, 3
      %p199 = pnand %p197, %p198
      %p200 = pneg %p199
      // Predicated region
      $region25: #{tpu_custom_call.1} parent=5 // pred_check
        _
      $region26: #{tpu_custom_call.1} parent=5 // pred_check_branch
        %202 = sbr.rel (%p199) target = $region28
      $region27: #{tpu_custom_call.1} parent=5 // pred_region
        %s203 = ssub.s32 %s17, 1
        %s204 = smul.u32 16, %s27
        %p205 = scmp.lt.s32.totalorder %s26, 1
        %s206 = scalar_select %p205, %s26, 1
        %p207 = scmp.lt.s32.totalorder %s204, 15
        %s208 = scalar_select %p207, %s204, 15
        %s209 = smul.addr %s206, 16
        %s210 = sadd.s32 %s208, %s209
        %s211 = smul.addr %s210, 8
        %s212 = scalar_lea.vmem %s0, %s211
        %p213 = pneg %p57
        %p214 = pneg %p54
        %p215 = pneg %p78
        %p216 = pneg %p75
        %p217 = pneg %p106
        %p218 = pneg %p103
        %s219 = sand.u32 %s93, 1
        %s220 = scalar_lea.sflag [#allocation3], %s219
        %s221 = sand.u32 %s93, 1
        %s222 = smul.addr %s221, 128
        %s223 = scalar_lea.vmem [#allocation2], %s222
        %p224 = pneg %p134
        %p225 = pneg %p131
        %s226 = sand.u32 %s22, 1
        %s227 = scalar_lea.sflag [#allocation5], %s226
        %s228 = sand.u32 %s121, 1
        %s229 = smul.addr %s228, 128
        %s230 = scalar_lea.vmem [#allocation4], %s229
        %p231 = pneg %p162
        %p232 = pneg %p159
        %s233 = sand.u32 %s22, 1
        %s234 = scalar_lea.sflag [#allocation5], %s233
        %s235 = sand.u32 %s149, 1
        %s236 = smul.addr %s235, 128
        %s237 = scalar_lea.vmem [#allocation6], %s236
        %s238 = smul.u32 16, %s27
        %p239 = scmp.lt.s32.totalorder %s26, 1
        %s240 = scalar_select %p239, %s26, 1
        %p241 = scmp.lt.s32.totalorder %s238, 15
        %s242 = scalar_select %p241, %s238, 15
        %s243 = smul.addr %s240, 16
        %s244 = sadd.s32 %s242, %s243
        %s245 = smul.addr %s244, 8
        %s246 = scalar_lea.vmem %s0, %s245
        %s247 = smul.u32 16, %s27
        %s248 = smul.u32 16, %s27
        %s249 = smul.u32 16, %s27
        %s250 = smul.u32 16, %s27
        %v251 = vld [vmem:[%s246] sm:$0xff]
        %v252 = vld [vmem:[%s246 + $0x8] sm:$0xff]
        %v253 = vld [vmem:[%s246 + $0x10] sm:$0xff]
        %v254 = vld [vmem:[%s246 + $0x18] sm:$0xff]
        %v255 = vld [vmem:[%s246 + $0x20] sm:$0xff]
        %v256 = vld [vmem:[%s246 + $0x28] sm:$0xff]
        %v257 = vld [vmem:[%s246 + $0x30] sm:$0xff]
        %v258 = vld [vmem:[%s246 + $0x38] sm:$0xff]
        %v259 = vld [vmem:[%s246 + $0x40] sm:$0xff]
        %v260 = vld [vmem:[%s246 + $0x48] sm:$0xff]
        %v261 = vld [vmem:[%s246 + $0x50] sm:$0xff]
        %v262 = vld [vmem:[%s246 + $0x58] sm:$0xff]
        %v263 = vld [vmem:[%s246 + $0x60] sm:$0xff]
        %v264 = vld [vmem:[%s246 + $0x68] sm:$0xff]
        %v265 = vld [vmem:[%s246 + $0x70] sm:$0xff]
        %v266 = vld [vmem:[%s246 + $0x78] sm:$0xff]
        %v267 = vld [vmem:[%s1] sm:$0xff]
        %v268 = vld [vmem:[%s1 + $0x8] sm:$0xff]
        %v269 = vld [vmem:[%s1 + $0x10] sm:$0xff]
        %v270 = vld [vmem:[%s1 + $0x18] sm:$0xff]
        %v271 = vld [vmem:[%s1 + $0x20] sm:$0xff]
        %v272 = vld [vmem:[%s1 + $0x28] sm:$0xff]
        %v273 = vld [vmem:[%s1 + $0x30] sm:$0xff]
        %v274 = vld [vmem:[%s1 + $0x38] sm:$0xff]
        %v275 = vld [vmem:[%s1 + $0x40] sm:$0xff]
        %v276 = vld [vmem:[%s1 + $0x48] sm:$0xff]
        %v277 = vld [vmem:[%s1 + $0x50] sm:$0xff]
        %v278 = vld [vmem:[%s1 + $0x58] sm:$0xff]
        %vm279 = vcmask 261120
        %v281 = vsel %vm279, %v251, 0
        %v284 = vsel %vm279, %v252, 0
        %v287 = vsel %vm279, %v253, 0
        %v290 = vsel %vm279, %v254, 0
        %v293 = vsel %vm279, %v255, 0
        %v296 = vsel %vm279, %v256, 0
        %v299 = vsel %vm279, %v257, 0
        %v302 = vsel %vm279, %v258, 0
        %v305 = vsel %vm279, %v259, 0
        %v308 = vsel %vm279, %v260, 0
        %v311 = vsel %vm279, %v261, 0
        %v314 = vsel %vm279, %v262, 0
        %v317 = vsel %vm279, %v263, 0
        %v320 = vsel %vm279, %v264, 0
        %v323 = vsel %vm279, %v265, 0
        %v326 = vsel %vm279, %v266, 0
        %328 = vmatprep.subr.mxu0 0.0
        %329 = vmatpush1.msra.mxu0 0.0
        %330 = vmatprep.subr.mxu0 0.0
        %331 = vmatpush1.msra.mxu0 0.0
        %332 = vmatprep.subr.mxu0 0.0
        %333 = vmatpush1.msra.mxu0 0.0
        %334 = vmatprep.subr.mxu0 0.0
        %335 = vmatpush1.msra.mxu0 0.0
        %336 = vmatprep.subr.mxu0 0.0
        %337 = vmatpush1.msra.mxu0 0.0
        %338 = vmatprep.subr.mxu0 0.0
        %339 = vmatpush1.msra.mxu0 0.0
        %340 = vmatprep.subr.mxu0 0.0
        %341 = vmatpush1.msra.mxu0 0.0
        %342 = vmatprep.subr.mxu0 0.0
        %343 = vmatpush1.msra.mxu0 0.0
        %344 = vmatprep.subr.mxu0 0.0
        %345 = vmatpush1.msra.mxu0 0.0
        %346 = vmatprep.subr.mxu0 0.0
        %347 = vmatpush1.msra.mxu0 0.0
        %348 = vmatprep.subr.mxu0 0.0
        %349 = vmatpush1.msra.mxu0 0.0
        %350 = vmatprep.subr.mxu0 0.0
        %351 = vmatpush1.msra.mxu0 0.0
        %352 = vmatprep.subr.mxu0 %v277
        %353 = vmatpush1.msra.mxu0 %v276
        %354 = vmatprep.subr.mxu0 %v274
        %355 = vmatpush1.msra.mxu0 %v273
        %356 = vmatprep.subr.mxu0 %v271
        %357 = vmatpush1.msra.mxu0 %v270
        %358 = vmatprep.subr.mxu0 %v268
        %359 = vmatpush1.msra.mxu0 %v267
        %360 = vmatprep.subr.mxu0 0.0
        %361 = vmatpush2.msra.mxu0 0.0
        %362 = vmatprep.subr.mxu0 0.0
        %363 = vmatpush2.msra.mxu0 0.0
        %364 = vmatprep.subr.mxu0 0.0
        %365 = vmatpush2.msra.mxu0 0.0
        %366 = vmatprep.subr.mxu0 0.0
        %367 = vmatpush2.msra.mxu0 0.0
        %368 = vmatprep.subr.mxu0 0.0
        %369 = vmatpush2.msra.mxu0 0.0
        %370 = vmatprep.subr.mxu0 0.0
        %371 = vmatpush2.msra.mxu0 0.0
        %372 = vmatprep.subr.mxu0 0.0
        %373 = vmatpush2.msra.mxu0 0.0
        %374 = vmatprep.subr.mxu0 0.0
        %375 = vmatpush2.msra.mxu0 0.0
        %376 = vmatprep.subr.mxu0 0.0
        %377 = vmatpush2.msra.mxu0 0.0
        %378 = vmatprep.subr.mxu0 0.0
        %379 = vmatpush2.msra.mxu0 0.0
        %380 = vmatprep.subr.mxu0 0.0
        %381 = vmatpush2.msra.mxu0 0.0
        %382 = vmatprep.subr.mxu0 0.0
        %383 = vmatpush2.msra.mxu0 0.0
        %384 = vmatprep.subr.mxu0 0.0
        %385 = vmatpush2.msra.mxu0 0.0
        %386 = vmatprep.subr.mxu0 0.0
        %387 = vmatpush2.msra.mxu0 0.0
        %388 = vmatprep.subr.mxu0 0.0
        %389 = vmatpush2.msra.mxu0 0.0
        %390 = vmatprep.subr.mxu0 0.0
        %391 = vmatpush2.msra.mxu0 0.0
        %392 = vmatprep.mubr.f32.mxu0 0.0
        %393 = vmatmul.mubr.f32.gmra.mxu0 %v281
        %v394 = vpop.f32.mrf.mxu0
        %v395 = vadd.f32 0.0, %v394
        %v396 = vpop.f32.mrf.mxu0
        %v397 = vadd.f32 0.0, %v396
        %398 = vmatprep.mubr.f32.mxu0 0.0
        %399 = vmatmul.mubr.f32.gmra.mxu0 %v284
        %v400 = vpop.f32.mrf.mxu0
        %v401 = vadd.f32 0.0, %v400
        %v402 = vpop.f32.mrf.mxu0
        %v403 = vadd.f32 0.0, %v402
        %404 = vmatprep.mubr.f32.mxu0 0.0
        %405 = vmatmul.mubr.f32.gmra.mxu0 %v287
        %v406 = vpop.f32.mrf.mxu0
        %v407 = vadd.f32 0.0, %v406
        %v408 = vpop.f32.mrf.mxu0
        %v409 = vadd.f32 0.0, %v408
        %410 = vmatprep.mubr.f32.mxu0 0.0
        %411 = vmatmul.mubr.f32.gmra.mxu0 %v290
        %v412 = vpop.f32.mrf.mxu0
        %v413 = vadd.f32 0.0, %v412
        %v414 = vpop.f32.mrf.mxu0
        %v415 = vadd.f32 0.0, %v414
        %416 = vmatprep.mubr.f32.mxu0 0.0
        %417 = vmatmul.mubr.f32.gmra.mxu0 %v293
        %v418 = vpop.f32.mrf.mxu0
        %v419 = vadd.f32 0.0, %v418
        %v420 = vpop.f32.mrf.mxu0
        %v421 = vadd.f32 0.0, %v420
        %422 = vmatprep.mubr.f32.mxu0 0.0
        %423 = vmatmul.mubr.f32.gmra.mxu0 %v296
        %v424 = vpop.f32.mrf.mxu0
        %v425 = vadd.f32 0.0, %v424
        %v426 = vpop.f32.mrf.mxu0
        %v427 = vadd.f32 0.0, %v426
        %428 = vmatprep.mubr.f32.mxu0 0.0
        %429 = vmatmul.mubr.f32.gmra.mxu0 %v299
        %v430 = vpop.f32.mrf.mxu0
        %v431 = vadd.f32 0.0, %v430
        %v432 = vpop.f32.mrf.mxu0
        %v433 = vadd.f32 0.0, %v432
        %434 = vmatprep.mubr.f32.mxu0 0.0
        %435 = vmatmul.mubr.f32.gmra.mxu0 %v302
        %v436 = vpop.f32.mrf.mxu0
        %v437 = vadd.f32 0.0, %v436
        %v438 = vpop.f32.mrf.mxu0
        %v439 = vadd.f32 0.0, %v438
        %440 = vmatprep.mubr.f32.mxu0 0.0
        %441 = vmatmul.mubr.f32.gmra.mxu0 %v305
        %v442 = vpop.f32.mrf.mxu0
        %v443 = vadd.f32 0.0, %v442
        %v444 = vpop.f32.mrf.mxu0
        %v445 = vadd.f32 0.0, %v444
        %446 = vmatprep.mubr.f32.mxu0 0.0
        %447 = vmatmul.mubr.f32.gmra.mxu0 %v308
        %v448 = vpop.f32.mrf.mxu0
        %v449 = vadd.f32 0.0, %v448
        %v450 = vpop.f32.mrf.mxu0
        %v451 = vadd.f32 0.0, %v450
        %452 = vmatprep.mubr.f32.mxu0 0.0
        %453 = vmatmul.mubr.f32.gmra.mxu0 %v311
        %v454 = vpop.f32.mrf.mxu0
        %v455 = vadd.f32 0.0, %v454
        %v456 = vpop.f32.mrf.mxu0
        %v457 = vadd.f32 0.0, %v456
        %458 = vmatprep.mubr.f32.mxu0 0.0
        %459 = vmatmul.mubr.f32.gmra.mxu0 %v314
        %v460 = vpop.f32.mrf.mxu0
        %v461 = vadd.f32 0.0, %v460
        %v462 = vpop.f32.mrf.mxu0
        %v463 = vadd.f32 0.0, %v462
        %464 = vmatprep.mubr.f32.mxu0 0.0
        %465 = vmatmul.mubr.f32.gmra.mxu0 %v317
        %v466 = vpop.f32.mrf.mxu0
        %v467 = vadd.f32 0.0, %v466
        %v468 = vpop.f32.mrf.mxu0
        %v469 = vadd.f32 0.0, %v468
        %470 = vmatprep.mubr.f32.mxu0 0.0
        %471 = vmatmul.mubr.f32.gmra.mxu0 %v320
        %v472 = vpop.f32.mrf.mxu0
        %v473 = vadd.f32 0.0, %v472
        %v474 = vpop.f32.mrf.mxu0
        %v475 = vadd.f32 0.0, %v474
        %476 = vmatprep.mubr.f32.mxu0 0.0
        %477 = vmatmul.mubr.f32.gmra.mxu0 %v323
        %v478 = vpop.f32.mrf.mxu0
        %v479 = vadd.f32 0.0, %v478
        %v480 = vpop.f32.mrf.mxu0
        %v481 = vadd.f32 0.0, %v480
        %482 = vmatprep.mubr.f32.mxu0 0.0
        %483 = vmatmul.mubr.f32.gmra.mxu0 %v326
        %v484 = vpop.f32.mrf.mxu0
        %v485 = vadd.f32 0.0, %v484
        %v486 = vpop.f32.mrf.mxu0
        %v487 = vadd.f32 0.0, %v486
        %488 = vdwg.mxu0
        %489 = vmatprep.subr.mxu0 0.0
        %490 = vmatpush1.msra.mxu0 0.0
        %491 = vmatprep.subr.mxu0 0.0
        %492 = vmatpush1.msra.mxu0 0.0
        %493 = vmatprep.subr.mxu0 0.0
        %494 = vmatpush1.msra.mxu0 0.0
        %495 = vmatprep.subr.mxu0 0.0
        %496 = vmatpush1.msra.mxu0 0.0
        %497 = vmatprep.subr.mxu0 0.0
        %498 = vmatpush1.msra.mxu0 0.0
        %499 = vmatprep.subr.mxu0 0.0
        %500 = vmatpush1.msra.mxu0 0.0
        %501 = vmatprep.subr.mxu0 0.0
        %502 = vmatpush1.msra.mxu0 0.0
        %503 = vmatprep.subr.mxu0 0.0
        %504 = vmatpush1.msra.mxu0 0.0
        %505 = vmatprep.subr.mxu0 0.0
        %506 = vmatpush1.msra.mxu0 0.0
        %507 = vmatprep.subr.mxu0 0.0
        %508 = vmatpush1.msra.mxu0 0.0
        %509 = vmatprep.subr.mxu0 0.0
        %510 = vmatpush1.msra.mxu0 0.0
        %511 = vmatprep.subr.mxu0 0.0
        %512 = vmatpush1.msra.mxu0 0.0
        %513 = vmatprep.subr.mxu0 0.0
        %514 = vmatpush1.msra.mxu0 %v278
        %515 = vmatprep.subr.mxu0 0.0
        %516 = vmatpush1.msra.mxu0 %v275
        %517 = vmatprep.subr.mxu0 0.0
        %518 = vmatpush1.msra.mxu0 %v272
        %519 = vmatprep.subr.mxu0 0.0
        %520 = vmatpush1.msra.mxu0 %v269
        %521 = vmatprep.subr.mxu0 0.0
        %522 = vmatpush2.msra.mxu0 0.0
        %523 = vmatprep.subr.mxu0 0.0
        %524 = vmatpush2.msra.mxu0 0.0
        %525 = vmatprep.subr.mxu0 0.0
        %526 = vmatpush2.msra.mxu0 0.0
        %527 = vmatprep.subr.mxu0 0.0
        %528 = vmatpush2.msra.mxu0 0.0
        %529 = vmatprep.subr.mxu0 0.0
        %530 = vmatpush2.msra.mxu0 0.0
        %531 = vmatprep.subr.mxu0 0.0
        %532 = vmatpush2.msra.mxu0 0.0
        %533 = vmatprep.subr.mxu0 0.0
        %534 = vmatpush2.msra.mxu0 0.0
        %535 = vmatprep.subr.mxu0 0.0
        %536 = vmatpush2.msra.mxu0 0.0
        %537 = vmatprep.subr.mxu0 0.0
        %538 = vmatpush2.msra.mxu0 0.0
        %539 = vmatprep.subr.mxu0 0.0
        %540 = vmatpush2.msra.mxu0 0.0
        %541 = vmatprep.subr.mxu0 0.0
        %542 = vmatpush2.msra.mxu0 0.0
        %543 = vmatprep.subr.mxu0 0.0
        %544 = vmatpush2.msra.mxu0 0.0
        %545 = vmatprep.subr.mxu0 0.0
        %546 = vmatpush2.msra.mxu0 0.0
        %547 = vmatprep.subr.mxu0 0.0
        %548 = vmatpush2.msra.mxu0 0.0
        %549 = vmatprep.subr.mxu0 0.0
        %550 = vmatpush2.msra.mxu0 0.0
        %551 = vmatprep.subr.mxu0 0.0
        %552 = vmatpush2.msra.mxu0 0.0
        %553 = vmatprep.mubr.f32.mxu0 0.0
        %554 = vmatmul.mubr.f32.gmra.mxu0 %v281
        %v555 = vpop.f32.mrf.mxu0
        %v556 = vadd.f32 0.0, %v555
        %v557 = vpop.f32.mrf.mxu0
        %558 = vmatprep.mubr.f32.mxu0 0.0
        %559 = vmatmul.mubr.f32.gmra.mxu0 %v284
        %v560 = vpop.f32.mrf.mxu0
        %v561 = vadd.f32 0.0, %v560
        %v562 = vpop.f32.mrf.mxu0
        %563 = vmatprep.mubr.f32.mxu0 0.0
        %564 = vmatmul.mubr.f32.gmra.mxu0 %v287
        %v565 = vpop.f32.mrf.mxu0
        %v566 = vadd.f32 0.0, %v565
        %v567 = vpop.f32.mrf.mxu0
        %568 = vmatprep.mubr.f32.mxu0 0.0
        %569 = vmatmul.mubr.f32.gmra.mxu0 %v290
        %v570 = vpop.f32.mrf.mxu0
        %v571 = vadd.f32 0.0, %v570
        %v572 = vpop.f32.mrf.mxu0
        %573 = vmatprep.mubr.f32.mxu0 0.0
        %574 = vmatmul.mubr.f32.gmra.mxu0 %v293
        %v575 = vpop.f32.mrf.mxu0
        %v576 = vadd.f32 0.0, %v575
        %v577 = vpop.f32.mrf.mxu0
        %578 = vmatprep.mubr.f32.mxu0 0.0
        %579 = vmatmul.mubr.f32.gmra.mxu0 %v296
        %v580 = vpop.f32.mrf.mxu0
        %v581 = vadd.f32 0.0, %v580
        %v582 = vpop.f32.mrf.mxu0
        %583 = vmatprep.mubr.f32.mxu0 0.0
        %584 = vmatmul.mubr.f32.gmra.mxu0 %v299
        %v585 = vpop.f32.mrf.mxu0
        %v586 = vadd.f32 0.0, %v585
        %v587 = vpop.f32.mrf.mxu0
        %588 = vmatprep.mubr.f32.mxu0 0.0
        %589 = vmatmul.mubr.f32.gmra.mxu0 %v302
        %v590 = vpop.f32.mrf.mxu0
        %v591 = vadd.f32 0.0, %v590
        %v592 = vpop.f32.mrf.mxu0
        %593 = vmatprep.mubr.f32.mxu0 0.0
        %594 = vmatmul.mubr.f32.gmra.mxu0 %v305
        %v595 = vpop.f32.mrf.mxu0
        %v596 = vadd.f32 0.0, %v595
        %v597 = vpop.f32.mrf.mxu0
        %598 = vmatprep.mubr.f32.mxu0 0.0
        %599 = vmatmul.mubr.f32.gmra.mxu0 %v308
        %v600 = vpop.f32.mrf.mxu0
        %v601 = vadd.f32 0.0, %v600
        %v602 = vpop.f32.mrf.mxu0
        %603 = vmatprep.mubr.f32.mxu0 0.0
        %604 = vmatmul.mubr.f32.gmra.mxu0 %v311
        %v605 = vpop.f32.mrf.mxu0
        %v606 = vadd.f32 0.0, %v605
        %v607 = vpop.f32.mrf.mxu0
        %608 = vmatprep.mubr.f32.mxu0 0.0
        %609 = vmatmul.mubr.f32.gmra.mxu0 %v314
        %v610 = vpop.f32.mrf.mxu0
        %v611 = vadd.f32 0.0, %v610
        %v612 = vpop.f32.mrf.mxu0
        %613 = vmatprep.mubr.f32.mxu0 0.0
        %614 = vmatmul.mubr.f32.gmra.mxu0 %v317
        %v615 = vpop.f32.mrf.mxu0
        %v616 = vadd.f32 0.0, %v615
        %v617 = vpop.f32.mrf.mxu0
        %618 = vmatprep.mubr.f32.mxu0 0.0
        %619 = vmatmul.mubr.f32.gmra.mxu0 %v320
        %v620 = vpop.f32.mrf.mxu0
        %v621 = vadd.f32 0.0, %v620
        %v622 = vpop.f32.mrf.mxu0
        %623 = vmatprep.mubr.f32.mxu0 0.0
        %624 = vmatmul.mubr.f32.gmra.mxu0 %v323
        %v625 = vpop.f32.mrf.mxu0
        %v626 = vadd.f32 0.0, %v625
        %v627 = vpop.f32.mrf.mxu0
        %628 = vmatprep.mubr.f32.mxu0 0.0
        %629 = vmatmul.mubr.f32.gmra.mxu0 %v326
        %v630 = vpop.f32.mrf.mxu0
        %v631 = vadd.f32 0.0, %v630
        %v632 = vpop.f32.mrf.mxu0
        %633 = vdwg.mxu0
        %v634 = vmul.f32 %v395, 0.25
        %v635 = vmul.f32 %v401, 0.25
        %v636 = vmul.f32 %v407, 0.25
        %v637 = vmul.f32 %v413, 0.25
        %v638 = vmul.f32 %v419, 0.25
        %v639 = vmul.f32 %v425, 0.25
        %v640 = vmul.f32 %v431, 0.25
        %v641 = vmul.f32 %v437, 0.25
        %v642 = vmul.f32 %v443, 0.25
        %v643 = vmul.f32 %v449, 0.25
        %v644 = vmul.f32 %v455, 0.25
        %v645 = vmul.f32 %v461, 0.25
        %v646 = vmul.f32 %v467, 0.25
        %v647 = vmul.f32 %v473, 0.25
        %v648 = vmul.f32 %v479, 0.25
        %v649 = vmul.f32 %v485, 0.25
        %650 = vst [vmem:[%s223] sm:$0xff] %v634
        %651 = vst [vmem:[%s223 + $0x8] sm:$0xff] %v635
        %652 = vst [vmem:[%s223 + $0x10] sm:$0xff] %v636
        %653 = vst [vmem:[%s223 + $0x18] sm:$0xff] %v637
        %654 = vst [vmem:[%s223 + $0x20] sm:$0xff] %v638
        %655 = vst [vmem:[%s223 + $0x28] sm:$0xff] %v639
        %656 = vst [vmem:[%s223 + $0x30] sm:$0xff] %v640
        %657 = vst [vmem:[%s223 + $0x38] sm:$0xff] %v641
        %658 = vst [vmem:[%s223 + $0x40] sm:$0xff] %v642
        %659 = vst [vmem:[%s223 + $0x48] sm:$0xff] %v643
        %660 = vst [vmem:[%s223 + $0x50] sm:$0xff] %v644
        %661 = vst [vmem:[%s223 + $0x58] sm:$0xff] %v645
        %662 = vst [vmem:[%s223 + $0x60] sm:$0xff] %v646
        %663 = vst [vmem:[%s223 + $0x68] sm:$0xff] %v647
        %664 = vst [vmem:[%s223 + $0x70] sm:$0xff] %v648
        %665 = vst [vmem:[%s223 + $0x78] sm:$0xff] %v649
        %666 = vst [vmem:[%s230] sm:$0xff] %v397
        %667 = vst [vmem:[%s230 + $0x8] sm:$0xff] %v403
        %668 = vst [vmem:[%s230 + $0x10] sm:$0xff] %v409
        %669 = vst [vmem:[%s230 + $0x18] sm:$0xff] %v415
        %670 = vst [vmem:[%s230 + $0x20] sm:$0xff] %v421
        %671 = vst [vmem:[%s230 + $0x28] sm:$0xff] %v427
        %672 = vst [vmem:[%s230 + $0x30] sm:$0xff] %v433
        %673 = vst [vmem:[%s230 + $0x38] sm:$0xff] %v439
        %674 = vst [vmem:[%s230 + $0x40] sm:$0xff] %v445
        %675 = vst [vmem:[%s230 + $0x48] sm:$0xff] %v451
        %676 = vst [vmem:[%s230 + $0x50] sm:$0xff] %v457
        %677 = vst [vmem:[%s230 + $0x58] sm:$0xff] %v463
        %678 = vst [vmem:[%s230 + $0x60] sm:$0xff] %v469
        %679 = vst [vmem:[%s230 + $0x68] sm:$0xff] %v475
        %680 = vst [vmem:[%s230 + $0x70] sm:$0xff] %v481
        %681 = vst [vmem:[%s230 + $0x78] sm:$0xff] %v487
        %682 = vst [vmem:[%s237] sm:$0xff] %v556
        %683 = vst [vmem:[%s237 + $0x8] sm:$0xff] %v561
        %684 = vst [vmem:[%s237 + $0x10] sm:$0xff] %v566
        %685 = vst [vmem:[%s237 + $0x18] sm:$0xff] %v571
        %686 = vst [vmem:[%s237 + $0x20] sm:$0xff] %v576
        %687 = vst [vmem:[%s237 + $0x28] sm:$0xff] %v581
        %688 = vst [vmem:[%s237 + $0x30] sm:$0xff] %v586
        %689 = vst [vmem:[%s237 + $0x38] sm:$0xff] %v591
        %690 = vst [vmem:[%s237 + $0x40] sm:$0xff] %v596
        %691 = vst [vmem:[%s237 + $0x48] sm:$0xff] %v601
        %692 = vst [vmem:[%s237 + $0x50] sm:$0xff] %v606
        %693 = vst [vmem:[%s237 + $0x58] sm:$0xff] %v611
        %694 = vst [vmem:[%s237 + $0x60] sm:$0xff] %v616
        %695 = vst [vmem:[%s237 + $0x68] sm:$0xff] %v621
        %696 = vst [vmem:[%s237 + $0x70] sm:$0xff] %v626
        %697 = vst [vmem:[%s237 + $0x78] sm:$0xff] %v631
        %s698 = sand.u32 %s93, 1
        %s699 = scalar_lea.sflag [#allocation3], %s698
        %s700 = sand.u32 %s93, 1
        %s701 = smul.addr %s700, 128
        %s702 = scalar_lea.vmem [#allocation2], %s701
        %s703 = sand.u32 %s22, 1
        %s704 = scalar_lea.sflag [#allocation5], %s703
        %s705 = sand.u32 %s121, 1
        %s706 = smul.addr %s705, 128
        %s707 = scalar_lea.vmem [#allocation4], %s706
        %s708 = sand.u32 %s22, 1
        %s709 = scalar_lea.sflag [#allocation5], %s708
        %s710 = sand.u32 %s149, 1
        %s711 = smul.addr %s710, 128
        %s712 = scalar_lea.vmem [#allocation6], %s711
        // Predicated region
        $region29: #{tpu_custom_call.1} parent=27 // pred_check
          %p713 = pneg %p103
        $region30: #{tpu_custom_call.1} parent=27 // pred_check_branch
          %715 = sbr.rel (%p713) target = $region32
        $region31: #{tpu_custom_call.1} parent=27 // pred_region
          %s716 = smul.u32 16, %s27
          %s718 = ssub.s32 2048, 2048
          %719 = vsyncadd %s699, %s718
          %s720 = smul.addr %s26, 16
          %s721 = sadd.s32 %s716, %s720
          %s722 = smul.addr %s721, 128
          %s723 = scalar_lea.hbm %s2, %s722
          %s724 = sshll.u32 %s702, 4
          %s725 = int_to_ptr.vmem [resolvable:$true] %s724
          %730 = dma.vmem_to_hbm [thread:$0]  %s725, 2048, %s723, %s699, 128, 128, 8
        $region32: #{tpu_custom_call.1} parent=27 // pred_fallthru
          _
        // Predicated region
        $region33: #{tpu_custom_call.1} parent=27 // pred_check
          %p731 = pneg %p131
        $region34: #{tpu_custom_call.1} parent=27 // pred_check_branch
          %733 = sbr.rel (%p731) target = $region36
        $region35: #{tpu_custom_call.1} parent=27 // pred_region
          %s734 = smul.u32 16, %s27
          %s736 = ssub.s32 2048, 2048
          %737 = vsyncadd %s704, %s736
          %s738 = smul.addr %s26, 16
          %s739 = sadd.s32 %s734, %s738
          %s740 = smul.addr %s739, 128
          %s741 = scalar_lea.hbm %s3, %s740
          %s742 = sshll.u32 %s707, 4
          %s743 = int_to_ptr.vmem [resolvable:$true] %s742
          %748 = dma.vmem_to_hbm [thread:$0]  %s743, 2048, %s741, %s704, 128, 128, 8
        $region36: #{tpu_custom_call.1} parent=27 // pred_fallthru
          _
        // Predicated region
        $region37: #{tpu_custom_call.1} parent=27 // pred_check
          %p749 = pneg %p159
        $region38: #{tpu_custom_call.1} parent=27 // pred_check_branch
          %751 = sbr.rel (%p749) target = $region40
        $region39: #{tpu_custom_call.1} parent=27 // pred_region
          %s752 = smul.u32 16, %s27
          %s754 = ssub.s32 2048, 2048
          %755 = vsyncadd %s709, %s754
          %s756 = smul.addr %s26, 16
          %s757 = sadd.s32 %s752, %s756
          %s758 = smul.addr %s757, 128
          %s759 = scalar_lea.hbm %s4, %s758
          %s760 = sshll.u32 %s712, 4
          %s761 = int_to_ptr.vmem [resolvable:$true] %s760
          %766 = dma.vmem_to_hbm [thread:$0]  %s761, 2048, %s759, %s709, 128, 128, 8
        $region40: #{tpu_custom_call.1} parent=27 // pred_fallthru
          _
      $region28: #{tpu_custom_call.1} parent=5 // pred_fallthru
        _
      %p767 = scmp.le.s32.totalorder 2, %s17
      // Predicated region
      $region41: #{tpu_custom_call.1} parent=5 // pred_check
        %p768 = pneg %p767
      $region42: #{tpu_custom_call.1} parent=5 // pred_check_branch
        %770 = sbr.rel (%p768) target = $region44
      $region43: #{tpu_custom_call.1} parent=5 // pred_region
        %s771 = ssub.s32 %s17, 2
        // Predicated region
        $region45: #{tpu_custom_call.1} parent=43 // pred_check
          %p772 = pneg %p109
        $region46: #{tpu_custom_call.1} parent=43 // pred_check_branch
          %774 = sbr.rel (%p772) target = $region48
        $region47: #{tpu_custom_call.1} parent=43 // pred_region
          %s775 = sand.u32 %s94, 1
          %s776 = scalar_lea.sflag [#allocation3], %s775
          %s777 = sand.u32 %s94, 1
          %s778 = smul.addr %s777, 128
          %s779 = scalar_lea.vmem [#allocation2], %s778
          %780 = dma.done %s776, 2048
        $region48: #{tpu_custom_call.1} parent=43 // pred_fallthru
          _
        // Predicated region
        $region49: #{tpu_custom_call.1} parent=43 // pred_check
          %p781 = pneg %p137
        $region50: #{tpu_custom_call.1} parent=43 // pred_check_branch
          %783 = sbr.rel (%p781) target = $region52
        $region51: #{tpu_custom_call.1} parent=43 // pred_region
          %s784 = sand.u32 %s23, 1
          %s785 = scalar_lea.sflag [#allocation5], %s784
          %s786 = sand.u32 %s122, 1
          %s787 = smul.addr %s786, 128
          %s788 = scalar_lea.vmem [#allocation4], %s787
          %789 = dma.done %s785, 2048
        $region52: #{tpu_custom_call.1} parent=43 // pred_fallthru
          _
        // Predicated region
        $region53: #{tpu_custom_call.1} parent=43 // pred_check
          %p790 = pneg %p165
        $region54: #{tpu_custom_call.1} parent=43 // pred_check_branch
          %792 = sbr.rel (%p790) target = $region56
        $region55: #{tpu_custom_call.1} parent=43 // pred_region
          %s793 = sand.u32 %s23, 1
          %s794 = scalar_lea.sflag [#allocation5], %s793
          %s795 = sand.u32 %s150, 1
          %s796 = smul.addr %s795, 128
          %s797 = scalar_lea.vmem [#allocation6], %s796
          %798 = dma.done %s794, 2048
        $region56: #{tpu_custom_call.1} parent=43 // pred_fallthru
          _
      $region44: #{tpu_custom_call.1} parent=5 // pred_fallthru
        _
    $region6: #{tpu_custom_call.1} parent=1 // loop_footer
      %s21 = sadd.s32 1, %s17
    $region7: #{tpu_custom_call.1} parent=1 // loop_footer_branch
      %16 = sbr.rel target = $region3
    $region8: #{tpu_custom_call.1} parent=1 // loop_exit
      _
    %799 = vsyncpa [#allocation3], 1
    %s800 = scalar_lea.sflag [#allocation3], 1
    %801 = vsyncpa %s800, 1
    %802 = vsyncpa [#allocation5], 1
    %s803 = scalar_lea.sflag [#allocation5], 1
    %804 = vsyncpa %s803, 1

</llo_original>
